<compile_context>
chip_gen: v6e
topology: v6e:2x2x1
jax: 0.10.0
libtpu: 0.0.40
codegen_flags: <defaults>
</compile_context>

<pallas_src>
import functools

import jax
import jax.numpy as jnp
from jax.experimental import pallas as pl
from jax.experimental.pallas import tpu as pltpu


def _append_cls_kernel(x_ref, w_ref, o_ref, *, row_elems: int, d_token: int):
    """x_ref: (bb, S*D), w_ref: (1, D), o_ref: (bb, (S+1)*D)."""
    # Bulk copy of the existing tokens: contiguous, lane-dense region [0, S*D).
    o_ref[:, pl.ds(0, row_elems)] = x_ref[...]
    # Append the CLS token at the tail of every batch row: lanes [S*D, S*D + D).
    bb = o_ref.shape[0]
    cls = jnp.broadcast_to(w_ref[...], (bb, d_token)).astype(o_ref.dtype)
    o_ref[:, pl.ds(row_elems, d_token)] = cls


def append_cls_token(x, weight, *, vmem_budget_bytes: int = 24 * 1024 * 1024):
    """Pallas equivalent of AppendCLSToken.forward: concat CLS row along seq axis."""
    assert x.ndim == 3
    b, s, d = x.shape
    assert weight.shape == (d,)
    dtype = x.dtype
    itemsize = jnp.dtype(dtype).itemsize

    # Free reshapes (row-major contiguous): present (S, D) / (S+1, D) as one lane axis.
    x2 = x.reshape(b, s * d)
    w2 = weight.reshape(1, d).astype(dtype)

    # Batch-tile sizing: double-buffered footprint ~= 2 * bb * (2S+1) * D * itemsize.
    sublane = max(8, 32 // itemsize)          # 8 for f32, 16 for bf16, 32 for int8
    per_row_bytes = (2 * s + 1) * d * itemsize
    cap = max(1, vmem_budget_bytes // (2 * per_row_bytes))
    if cap >= b:
        bb = b                                 # whole batch in one step (block == full dim)
    else:
        bb = max(sublane, (cap // sublane) * sublane)  # keep sublane-packed row tiles
    grid = (pl.cdiv(b, bb),)

    kernel = functools.partial(_append_cls_kernel, row_elems=s * d, d_token=d)

    out2 = pl.pallas_call(
        kernel,
        out_shape=jax.ShapeDtypeStruct((b, (s + 1) * d), dtype),
        grid_spec=pltpu.PrefetchScalarGridSpec(
            num_scalar_prefetch=0,
            grid=grid,
            in_specs=[
                pl.BlockSpec((bb, s * d), lambda i: (i, 0)),   # x rows (lane-dense)
                pl.BlockSpec((1, d), lambda i: (0, 0)),        # CLS weights (resident)
            ],
            out_specs=pl.BlockSpec((bb, (s + 1) * d), lambda i: (i, 0)),
        ),
        compiler_params=pltpu.CompilerParams(
            dimension_semantics=("parallel",),                 # lets v7x use both TCs
            vmem_limit_bytes=48 * 1024 * 1024,                 # > v5e/v6e scoped default,
        ),                                                     # < v7x 64 MiB physical
    )(x2, w2)

    return out2.reshape(b, s + 1, d)


def _reference(x, weight):
    b = x.shape[0]
    cls = jnp.broadcast_to(weight.reshape(1, 1, -1), (b, 1, weight.shape[0]))
    return jnp.concatenate([x, cls.astype(x.dtype)], axis=1)


if __name__ == "__main__":
    batch, seq, hidden = 2, 8, 32  # x.ndim == 3 as the module asserts
    key = jax.random.PRNGKey(0)
    kx, kw = jax.random.split(key, 2)

    x = jax.random.normal(kx, (batch, seq, hidden), dtype=jnp.float32)
    # Kaiming-uniform-style init like the PyTorch module: U(-1/sqrt(d), 1/sqrt(d)).
    d_sqrt_inv = 1.0 / (hidden ** 0.5)
    weight = jax.random.uniform(kw, (hidden,), dtype=jnp.float32,
                                minval=-d_sqrt_inv, maxval=d_sqrt_inv)

    out = append_cls_token(x, weight)
    out = jax.block_until_ready(out)

    ref = _reference(x, weight)
    assert out.shape == (batch, seq + 1, hidden), f"bad shape {out.shape}"
    assert jnp.allclose(out, ref), "mismatch vs reference"
    print("KERNEL_OK")
</pallas_src>

<mosaic_0001>
module attributes {stable_mosaic.version = 11 : i64} {
  func.func @_append_cls_kernel(%arg0: i32, %arg1: memref<2x256xf32, #tpu.memory_space<vmem>>, %arg2: memref<1x32xf32, #tpu.memory_space<vmem>>, %arg3: memref<2x288xf32, #tpu.memory_space<vmem>>) attributes {dimension_semantics = [#tpu.dimension_semantics<parallel>], iteration_bounds = array<i64: 1>, scalar_prefetch = 0 : i64, scratch_operands = 0 : i64, tpu.core_type = #tpu.core_type<tc>, window_params = [{transform_indices = @transform_0, window_bounds = array<i64: 2, 256>}, {pipeline_mode = #tpu.pipeline_mode<synchronous>, transform_indices = @transform_1, window_bounds = array<i64: 1, 32>}, {transform_indices = @transform_2, window_bounds = array<i64: 2, 288>}]} {
    %c0 = arith.constant 0 : index
    %c0_0 = arith.constant 0 : index
    %0 = vector.load %arg1[%c0, %c0_0] : memref<2x256xf32, #tpu.memory_space<vmem>>, vector<2x256xf32>
    %c0_1 = arith.constant 0 : index
    %c0_2 = arith.constant 0 : index
    %1 = vector.load %arg3[%c0_1, %c0_2] : memref<2x288xf32, #tpu.memory_space<vmem>>, vector<2x256xf32>
    tpu.vector_store %arg3[%c0_1, %c0_2], %0 {strides = array<i32>} : memref<2x288xf32, #tpu.memory_space<vmem>>, vector<2x256xf32>,
    %c0_3 = arith.constant 0 : index
    %c0_4 = arith.constant 0 : index
    %2 = vector.load %arg2[%c0_3, %c0_4] : memref<1x32xf32, #tpu.memory_space<vmem>>, vector<1x32xf32>
    %3 = vector.shape_cast %2 : vector<1x32xf32> to vector<1x32xf32>
    %4 = vector.broadcast %3 : vector<1x32xf32> to vector<2x32xf32>
    %c0_5 = arith.constant 0 : index
    %c256 = arith.constant 256 : index
    %5 = vector.load %arg3[%c0_5, %c256] : memref<2x288xf32, #tpu.memory_space<vmem>>, vector<2x32xf32>
    tpu.vector_store %arg3[%c0_5, %c256], %4 {strides = array<i32>} : memref<2x288xf32, #tpu.memory_space<vmem>>, vector<2x32xf32>,
    return
  }
  func.func @transform_0(%arg0: i32) -> (i32, i32) {
    %c0_i32 = arith.constant 0 : i32
    %c0_i32_0 = arith.constant 0 : i32
    return %arg0, %c0_i32 : i32, i32
  }
  func.func @transform_1(%arg0: i32) -> (i32, i32) {
    %c0_i32 = arith.constant 0 : i32
    %c0_i32_0 = arith.constant 0 : i32
    %c0_i32_1 = arith.constant 0 : i32
    return %c0_i32, %c0_i32_0 : i32, i32
  }
  func.func @transform_2(%arg0: i32) -> (i32, i32) {
    %c0_i32 = arith.constant 0 : i32
    %c0_i32_0 = arith.constant 0 : i32
    return %arg0, %c0_i32 : i32, i32
  }
}

</mosaic_0001>

<llo_original>
// kernel: tpu_custom_call.1
$region0: #{tpu_custom_call.1}
  #allocation0 [shape = 'u32[]', space=smem, size = 0x4, offset = 0x4, fixed_abs, tag = 'smem constant byte address 0x4 - core index']
  #allocation1 [shape = 'u32[144,128]{1,0:T(1,128)}', space=vmem, size = 0x12000, scoped, tag = 'internal scratch']
  %s0 = inlined_call_operand.hbm [shape: f32[2,256], index: 0, kind: input, shape index: {}]
  %s1 = inlined_call_operand.vmem [shape: f32[1,32], index: 1, kind: input, shape index: {}]
  %s2 = inlined_call_operand.hbm [shape: f32[2,288], index: 2, kind: output, shape index: {}]
  %s3 = sld [smem:[#allocation0]]
  $region22: #{tpu_custom_call.1} parent=0
    _
  %s5 = ssub.s32 1, %s3
  %s6 = scalar_select 0, %s5, %s3
  $region1: #{tpu_custom_call.1} parent=0
    #allocation2 [shape = 'u8[2048]{0}', space=vmem, size = 0x800, scoped, tag = 'input window, operand 0, single buffered']
    #allocation3 [shape = 's32[1]{0}', space=sflag, size = 0x4, scoped, tag = 'scoped memory for tpu_custom_call.1']
    #allocation4 [shape = 's32[1]{0}', space=sflag, size = 0x4, scoped, tag = 'scoped memory for tpu_custom_call.1']
    #allocation5 [shape = 'u8[3072]{0}', space=vmem, size = 0xc00, scoped, tag = 'output window, operand 0, single buffered']
    %7 = vsyncpa [#allocation3], 0
    %8 = vsyncpa [#allocation4], 0
    // Predicated region
    $region2: #{tpu_custom_call.1} parent=1 // pred_check
      _
    $region3: #{tpu_custom_call.1} parent=1 // pred_check_branch
      %10 = sbr.rel (0) target = $region5
    $region4: #{tpu_custom_call.1} parent=1 // pred_region
      %s12 = ssub.s32 64, 64
      %13 = vsyncadd [#allocation3], %s12
      %s15 = sshll.u32 [#allocation2], 4
      %s16 = int_to_ptr.vmem [resolvable:$true] %s15
      %18 = dma.hbm_to_vmem [thread:$0]  %s0, 64, %s16, [#allocation3]
    $region5: #{tpu_custom_call.1} parent=1 // pred_fallthru
      _
    // Predicated region
    $region6: #{tpu_custom_call.1} parent=1 // pred_check
      _
    $region7: #{tpu_custom_call.1} parent=1 // pred_check_branch
      %20 = sbr.rel (0) target = $region9
    $region8: #{tpu_custom_call.1} parent=1 // pred_region
      _
    $region9: #{tpu_custom_call.1} parent=1 // pred_fallthru
      _
    // Predicated region
    $region10: #{tpu_custom_call.1} parent=1 // pred_check
      _
    $region11: #{tpu_custom_call.1} parent=1 // pred_check_branch
      %22 = sbr.rel (0) target = $region13
    $region12: #{tpu_custom_call.1} parent=1 // pred_region
      %23 = dma.done [#allocation3], 64
    $region13: #{tpu_custom_call.1} parent=1 // pred_fallthru
      _
    %v24 = vld [vmem:[#allocation2] sm:$0xf]
    %25 = vst [vmem:[#allocation5] sm:$0xf] %v24
    %v26 = vld [vmem:[%s1] sm:$0x1]
    %v28 = vlaneseq
    %v29 = vshrl.u32 %v28, 7
    %v30 = vsub.s32 0, %v29
    %v31 = vrot.slane %v26, %v30
    %vm33 = vcmask 254976
    %34 = vst.msk [vmem:[#allocation5 + $0x4] sm:$0x3] %vm33, %v31
    // Predicated region
    $region14: #{tpu_custom_call.1} parent=1 // pred_check
      _
    $region15: #{tpu_custom_call.1} parent=1 // pred_check_branch
      %36 = sbr.rel (0) target = $region17
    $region16: #{tpu_custom_call.1} parent=1 // pred_region
      %s38 = ssub.s32 96, 96
      %39 = vsyncadd [#allocation4], %s38
      %s41 = sshll.u32 [#allocation5], 4
      %s42 = int_to_ptr.vmem [resolvable:$true] %s41
      %44 = dma.vmem_to_hbm [thread:$0]  %s42, 96, %s2, [#allocation4]
    $region17: #{tpu_custom_call.1} parent=1 // pred_fallthru
      _
    // Predicated region
    $region18: #{tpu_custom_call.1} parent=1 // pred_check
      _
    $region19: #{tpu_custom_call.1} parent=1 // pred_check_branch
      %46 = sbr.rel (0) target = $region21
    $region20: #{tpu_custom_call.1} parent=1 // pred_region
      %47 = dma.done [#allocation4], 96
    $region21: #{tpu_custom_call.1} parent=1 // pred_fallthru
      _
    %48 = vsyncpa [#allocation3], 1
    %49 = vsyncpa [#allocation4], 1

</llo_original>
